<compile_context>
chip_gen: v7x
topology: tpu7x:2x2x1
jax: 0.10.0
libtpu: 0.0.40
codegen_flags: <defaults>
</compile_context>

<pallas_src>
import functools

import jax
import jax.numpy as jnp
from jax import lax
from jax.experimental import pallas as pl
from jax.experimental.pallas import tpu as pltpu

ALPHA = 0.25
GAMMA = 2.0


def _round_up(x, m):
    return ((x + m - 1) // m) * m


def _choose_block_n(n, c, itemsize):
    """Pick a row-tile size: big enough to approach HBM roofline, small enough
    that 2 double-buffered logits tiles stay well under every gen's scoped
    VMEM default (v5e 16 MiB, v6e 32 MiB, v7x 32 MiB of 64 MiB physical)."""
    target_tile_bytes = 4 * 1024 * 1024          # ~4 MiB per logits tile
    bn = target_tile_bytes // max(1, c * itemsize)
    bn = max(8, min(1024, bn))
    bn = (bn // 8) * 8                            # sublane multiple
    bn = max(8, min(bn, _round_up(n, 8)))         # never bigger than (padded) N
    return int(bn)


def _focal_loss_kernel(logits_ref, targets_ref, out_ref, *, gamma, n, block_n):
    """One grid step: (block_n, C) logits + (block_n, 1) targets ->
    one partial sum of (1 - pt)^gamma * ce over the valid rows of the block."""
    pid = pl.program_id(0)

    logits = logits_ref[...].astype(jnp.float32)          # (block_n, C), cast in-kernel
    tgt = targets_ref[...]                                 # (block_n, 1) int32

    # --- cross entropy (reduction='none'), numerically stable log-softmax ---
    m = jnp.max(logits, axis=-1, keepdims=True)            # (block_n, 1)
    shifted = logits - m                                    # (block_n, C)
    lse = jnp.log(jnp.sum(jnp.exp(shifted), axis=-1, keepdims=True)) + m  # (block_n, 1)

    class_ids = lax.broadcasted_iota(jnp.int32, logits.shape, 1)          # (block_n, C)
    onehot = (class_ids == tgt).astype(jnp.float32)                       # (block_n, C)
    tgt_logit = jnp.sum(logits * onehot, axis=-1, keepdims=True)          # (block_n, 1)

    ce = lse - tgt_logit                                    # per-sample CE

    # --- focal weighting (alpha and 1/N are folded in by the wrapper) ---
    pt = jnp.exp(-ce)
    w = jnp.maximum(1.0 - pt, 0.0)                          # clamp: robust to pt > 1
    if gamma == 2.0:
        wpow = w * w                                        # VALU mul, no float pow
    else:
        wpow = w ** gamma
    contrib = wpow * ce                                     # (block_n, 1)

    # --- mask the padded tail rows of the last block ---
    valid_rows = n - pid * block_n                          # may exceed block_n; fine
    row_ids = lax.broadcasted_iota(jnp.int32, contrib.shape, 0)
    contrib = jnp.where(row_ids < valid_rows, contrib, 0.0)

    # --- per-block partial sum ---
    out_ref[...] = jnp.sum(contrib).reshape(1, 1, 1)


def focal_loss(logits, targets, alpha=ALPHA, gamma=GAMMA, block_n=None):
    """logits: (N, C) float (f32 or bf16); targets: (N,) int class indices.
    Returns the scalar mean focal loss (reduction='mean')."""
    n, c = logits.shape
    targets2d = targets.astype(jnp.int32).reshape(n, 1)

    if block_n is None:
        block_n = _choose_block_n(n, c, jnp.dtype(logits.dtype).itemsize)
    num_blocks = pl.cdiv(n, block_n)

    kernel = functools.partial(
        _focal_loss_kernel, gamma=float(gamma), n=n, block_n=block_n
    )

    partials = pl.pallas_call(
        kernel,
        out_shape=jax.ShapeDtypeStruct((num_blocks, 1, 1), jnp.float32),
        grid=(num_blocks,),
        in_specs=[
            pl.BlockSpec((block_n, c), lambda i: (i, 0)),   # logits rows
            pl.BlockSpec((block_n, 1), lambda i: (i, 0)),   # targets rows
        ],
        out_specs=pl.BlockSpec((1, 1, 1), lambda i: (i, 0, 0)),
        compiler_params=pltpu.CompilerParams(
            dimension_semantics=("parallel",),              # lets v7x split blocks across TCs
        ),
    )(logits, targets2d)

    # reduction='mean' with alpha and 1/N folded into one scalar.
    return jnp.sum(partials) * jnp.float32(float(alpha) / n)


def _reference_focal_loss(logits, targets, alpha=ALPHA, gamma=GAMMA):
    # Pure-JAX reference matching F.cross_entropy + focal weighting.
    logp = jax.nn.log_softmax(logits.astype(jnp.float32), axis=-1)
    ce = -jnp.take_along_axis(logp, targets[:, None].astype(jnp.int32), axis=-1)[:, 0]
    pt = jnp.exp(-ce)
    return jnp.mean(alpha * (1.0 - pt) ** gamma * ce)


if __name__ == "__main__":
    key = jax.random.PRNGKey(0)
    k_logits, k_targets = jax.random.split(key)

    # Small shapes; N not a multiple of block_n to exercise the masked tail block.
    N, C = 37, 16
    logits = jax.random.normal(k_logits, (N, C), dtype=jnp.float32)
    targets = jax.random.randint(k_targets, (N,), 0, C, dtype=jnp.int32)

    # Multi-block path (grid of 3, last block partially valid).
    loss = focal_loss(logits, targets, block_n=16)
    loss = jax.block_until_ready(loss)
    ref = _reference_focal_loss(logits, targets)
    assert jnp.allclose(loss, ref, atol=1e-5, rtol=1e-5), (loss, ref)

    # bf16 ingest path: no wrapper-side f32 copy, cast happens inside the kernel.
    logits_bf16 = logits.astype(jnp.bfloat16)
    loss_bf16 = jax.block_until_ready(focal_loss(logits_bf16, targets))
    ref_bf16 = _reference_focal_loss(logits_bf16.astype(jnp.float32), targets)
    assert jnp.allclose(loss_bf16, ref_bf16, atol=1e-4, rtol=1e-4), (loss_bf16, ref_bf16)

    print("KERNEL_OK")
</pallas_src>

<mosaic_0001>
module attributes {stable_mosaic.version = 11 : i64} {
  func.func @_focal_loss_kernel(%arg0: i32, %arg1: memref<16x16xf32, #tpu.memory_space<vmem>>, %arg2: memref<16x1xi32, #tpu.memory_space<vmem>>, %arg3: memref<1x1x1xf32, #tpu.memory_space<vmem>>) attributes {dimension_semantics = [#tpu.dimension_semantics<parallel>], iteration_bounds = array<i64: 3>, scalar_prefetch = 0 : i64, scratch_operands = 0 : i64, tpu.core_type = #tpu.core_type<tc>, window_params = [{transform_indices = @transform_0, window_bounds = array<i64: 16, 16>}, {transform_indices = @transform_1, window_bounds = array<i64: 16, 1>}, {transform_indices = @transform_2, window_bounds = array<i64: 1, 1, 1>}]} {
    %c0 = arith.constant 0 : index
    %c0_0 = arith.constant 0 : index
    %0 = vector.load %arg1[%c0, %c0_0] : memref<16x16xf32, #tpu.memory_space<vmem>>, vector<16x16xf32>
    %c0_1 = arith.constant 0 : index
    %c0_2 = arith.constant 0 : index
    %1 = vector.load %arg2[%c0_1, %c0_2] : memref<16x1xi32, #tpu.memory_space<vmem>>, vector<16x1xi32>
    %cst = arith.constant dense<0xFF800000> : vector<16xf32>
    %2 = vector.multi_reduction <maximumf>, %0, %cst [1] : vector<16x16xf32> to vector<16xf32>
    %3 = vector.shape_cast %2 : vector<16xf32> to vector<16x1xf32>
    %4 = vector.broadcast %3 : vector<16x1xf32> to vector<16x16xf32>
    %5 = arith.subf %0, %4 : vector<16x16xf32>
    %6 = math.exp %5 : vector<16x16xf32>
    %cst_3 = arith.constant dense<0.000000e+00> : vector<16xf32>
    %7 = vector.multi_reduction <add>, %6, %cst_3 [1] : vector<16x16xf32> to vector<16xf32>
    %8 = vector.shape_cast %7 : vector<16xf32> to vector<16x1xf32>
    %9 = math.log %8 : vector<16x1xf32>
    %10 = arith.addf %9, %3 : vector<16x1xf32>
    %11 = tpu.iota {dimensions = array<i32: 1>} : vector<16x16xi32>
    %12 = vector.broadcast %1 : vector<16x1xi32> to vector<16x16xi32>
    %13 = arith.cmpi eq, %11, %12 : vector<16x16xi32>
    %14 = arith.extui %13 : vector<16x16xi1> to vector<16x16xi32>
    %15 = arith.sitofp %14 : vector<16x16xi32> to vector<16x16xf32>
    %16 = arith.mulf %0, %15 : vector<16x16xf32>
    %cst_4 = arith.constant dense<0.000000e+00> : vector<16xf32>
    %17 = vector.multi_reduction <add>, %16, %cst_4 [1] : vector<16x16xf32> to vector<16xf32>
    %18 = vector.shape_cast %17 : vector<16xf32> to vector<16x1xf32>
    %19 = arith.subf %10, %18 : vector<16x1xf32>
    %cst_5 = arith.constant 0.000000e+00 : f32
    %20 = vector.broadcast %cst_5 : f32 to vector<16x1xf32>
    %21 = arith.subf %20, %19 : vector<16x1xf32>
    %22 = math.exp %21 : vector<16x1xf32>
    %cst_6 = arith.constant 1.000000e+00 : f32
    %23 = vector.broadcast %cst_6 : f32 to vector<16x1xf32>
    %24 = arith.subf %23, %22 : vector<16x1xf32>
    %cst_7 = arith.constant 0.000000e+00 : f32
    %25 = vector.broadcast %cst_7 : f32 to vector<16x1xf32>
    %26 = arith.maximumf %24, %25 : vector<16x1xf32>
    %27 = arith.mulf %26, %26 : vector<16x1xf32>
    %28 = arith.mulf %27, %19 : vector<16x1xf32>
    %c16_i32 = arith.constant 16 : i32
    %29 = arith.muli %arg0, %c16_i32 : i32
    %c37_i32 = arith.constant 37 : i32
    %30 = arith.subi %c37_i32, %29 : i32
    %31 = tpu.iota {dimensions = array<i32: 0>} : vector<16x1xi32>
    %32 = vector.broadcast %30 : i32 to vector<16x1xi32>
    %33 = arith.cmpi slt, %31, %32 : vector<16x1xi32>
    %cst_8 = arith.constant 0.000000e+00 : f32
    %34 = vector.broadcast %cst_8 : f32 to vector<16x1xf32>
    %35 = arith.select %33, %28, %34 : vector<16x1xi1>, vector<16x1xf32>
    %36 = vector.shape_cast %35 : vector<16x1xf32> to vector<1x16x1xf32>
    %cst_9 = arith.constant dense<0.000000e+00> : vector<1xf32>
    %37 = vector.multi_reduction <add>, %36, %cst_9 [1, 2] : vector<1x16x1xf32> to vector<1xf32>
    %38 = vector.shape_cast %37 : vector<1xf32> to vector<1x1x1xf32>
    %39 = vector.extract %38[0, 0, 0] : f32 from vector<1x1x1xf32>
    %40 = vector.broadcast %39 : f32 to vector<1x1x1xf32>
    %c0_10 = arith.constant 0 : index
    %c0_11 = arith.constant 0 : index
    %c0_12 = arith.constant 0 : index
    %41 = vector.load %arg3[%c0_10, %c0_11, %c0_12] : memref<1x1x1xf32, #tpu.memory_space<vmem>>, vector<1x1x1xf32>
    tpu.vector_store %arg3[%c0_10, %c0_11, %c0_12], %40 {strides = array<i32>} : memref<1x1x1xf32, #tpu.memory_space<vmem>>, vector<1x1x1xf32>,
    return
  }
  func.func @transform_0(%arg0: i32) -> (i32, i32) {
    %c0_i32 = arith.constant 0 : i32
    %c0_i32_0 = arith.constant 0 : i32
    return %arg0, %c0_i32 : i32, i32
  }
  func.func @transform_1(%arg0: i32) -> (i32, i32) {
    %c0_i32 = arith.constant 0 : i32
    %c0_i32_0 = arith.constant 0 : i32
    return %arg0, %c0_i32 : i32, i32
  }
  func.func @transform_2(%arg0: i32) -> (i32, i32, i32) {
    %c0_i32 = arith.constant 0 : i32
    %c0_i32_0 = arith.constant 0 : i32
    %c0_i32_1 = arith.constant 0 : i32
    return %arg0, %c0_i32, %c0_i32_0 : i32, i32, i32
  }
}

</mosaic_0001>

<llo_original>
// kernel: tpu_custom_call.1
$region0: #{tpu_custom_call.1}
  #allocation0 [shape = 'u32[]', space=smem, size = 0x4, offset = 0x4, fixed_abs, tag = 'smem constant byte address 0x4 - core index']
  #allocation1 [shape = 'u32[144,128]{1,0:T(1,128)}', space=vmem, size = 0x12000, scoped, tag = 'internal scratch']
  %s0 = inlined_call_operand.vmem [shape: f32[37,16], index: 0, kind: input, shape index: {}]
  %s1 = inlined_call_operand.vmem [shape: s32[37,1], index: 1, kind: input, shape index: {}]
  %s2 = inlined_call_operand.vmem [shape: f32[3,1,1], index: 2, kind: output, shape index: {}]
  %s3 = sld [smem:[#allocation0]]
  $region41: #{tpu_custom_call.1} parent=0
    _
  %s5 = ssub.s32 1, %s3
  %s6 = scalar_select 0, %s5, %s3
  loop: start=0, step=1, limit=5
  $region2: #{tpu_custom_call.1} parent=0 // loop_pre_header
    _
  $region3: #{tpu_custom_call.1} parent=0 // loop_header
    %s8 = sphi 0, %s12
    %p9 = scmp.ge.s32.totalorder %s8, 5
    %s18 = sphi 0, %s20
    %s21 = sphi 0, %s18
    %s22 = sphi 0, %s21
    %s38 = sphi 0, %s22
    %s44 = sphi 0, %s46
    %s47 = sphi 0, %s44
    %s48 = sphi 0, %s47
    %s64 = sphi 0, %s48
    %s70 = sphi 0, %s72
    %s73 = sphi 0, %s70
    %s74 = sphi 0, %s73
    %s90 = sphi 0, %s74
  $region4: #{tpu_custom_call.1} parent=0 // loop_header_branch
    %11 = sbr.rel (%p9) target = $region8
  $region5: #{tpu_custom_call.1} parent=0 // loop_body
    %s13 = ssub.s32 %s8, 1
    %s14 = ssub.s32 %s8, 2
    %s15 = sadd.s32 %s8, 1
    %s16 = ssub.s32 %s8, %s15
    %p17 = scmp.eq.s32.totalorder %s16, 0
    %s19 = sadd.s32 %s18, 1
    %s20 = scalar_select %p17, %s18, %s19
    %p23 = pneg %p17
    %p24 = scmp.eq.s32.totalorder %s8, 2
    %p25 = por %p23, %p24
    %p26 = scmp.ne.s32.totalorder %s18, %s21
    %p27 = scmp.eq.s32.totalorder %s8, 0
    %p28 = por %p26, %p27
    %p29 = scmp.ne.s32.totalorder %s18, %s21
    %p30 = scmp.eq.s32.totalorder %s13, 2
    %p31 = por %p29, %p30
    %p32 = scmp.ne.s32.totalorder %s21, %s22
    %p33 = scmp.eq.s32.totalorder %s13, 0
    %p34 = por %p32, %p33
    %p35 = scmp.ne.s32.totalorder %s21, %s22
    %p36 = scmp.eq.s32.totalorder %s14, 2
    %p37 = por %p35, %p36
    %p39 = scmp.ne.s32.totalorder %s22, %s38
    %p40 = scmp.eq.s32.totalorder %s14, 0
    %p41 = por %p39, %p40
    %s42 = ssub.s32 %s8, %s15
    %p43 = scmp.eq.s32.totalorder %s42, 0
    %s45 = sadd.s32 %s44, 1
    %s46 = scalar_select %p43, %s44, %s45
    %p49 = pneg %p43
    %p50 = scmp.eq.s32.totalorder %s8, 2
    %p51 = por %p49, %p50
    %p52 = scmp.ne.s32.totalorder %s44, %s47
    %p53 = scmp.eq.s32.totalorder %s8, 0
    %p54 = por %p52, %p53
    %p55 = scmp.ne.s32.totalorder %s44, %s47
    %p56 = scmp.eq.s32.totalorder %s13, 2
    %p57 = por %p55, %p56
    %p58 = scmp.ne.s32.totalorder %s47, %s48
    %p59 = scmp.eq.s32.totalorder %s13, 0
    %p60 = por %p58, %p59
    %p61 = scmp.ne.s32.totalorder %s47, %s48
    %p62 = scmp.eq.s32.totalorder %s14, 2
    %p63 = por %p61, %p62
    %p65 = scmp.ne.s32.totalorder %s48, %s64
    %p66 = scmp.eq.s32.totalorder %s14, 0
    %p67 = por %p65, %p66
    %s68 = ssub.s32 %s8, %s15
    %p69 = scmp.eq.s32.totalorder %s68, 0
    %s71 = sadd.s32 %s70, 1
    %s72 = scalar_select %p69, %s70, %s71
    %p75 = pneg %p69
    %p76 = scmp.eq.s32.totalorder %s8, 2
    %p77 = por %p75, %p76
    %p78 = scmp.ne.s32.totalorder %s70, %s73
    %p79 = scmp.eq.s32.totalorder %s8, 0
    %p80 = por %p78, %p79
    %p81 = scmp.ne.s32.totalorder %s70, %s73
    %p82 = scmp.eq.s32.totalorder %s13, 2
    %p83 = por %p81, %p82
    %p84 = scmp.ne.s32.totalorder %s73, %s74
    %p85 = scmp.eq.s32.totalorder %s13, 0
    %p86 = por %p84, %p85
    %p87 = scmp.ne.s32.totalorder %s73, %s74
    %p88 = scmp.eq.s32.totalorder %s14, 2
    %p89 = por %p87, %p88
    %p91 = scmp.ne.s32.totalorder %s74, %s90
    %p92 = scmp.eq.s32.totalorder %s14, 0
    %p93 = por %p91, %p92
    %p94 = scmp.le.s32.totalorder 1, %s8
    %p95 = scmp.lt.s32.totalorder %s8, 4
    %p96 = pnand %p94, %p95
    %p97 = pneg %p96
    // Predicated region
    $region9: #{tpu_custom_call.1} parent=5 // pred_check
      _
    $region10: #{tpu_custom_call.1} parent=5 // pred_check_branch
      %99 = sbr.rel (%p96) target = $region12
    $region11: #{tpu_custom_call.1} parent=5 // pred_region
      %s100 = ssub.s32 %s8, 1
    $region12: #{tpu_custom_call.1} parent=5 // pred_fallthru
      _
    %p101 = scmp.lt.s32.totalorder %s8, 3
    // Predicated region
    $region13: #{tpu_custom_call.1} parent=5 // pred_check
      %p102 = pneg %p101
    $region14: #{tpu_custom_call.1} parent=5 // pred_check_branch
      %104 = sbr.rel (%p102) target = $region16
    $region15: #{tpu_custom_call.1} parent=5 // pred_region
      // Predicated region
      $region17: #{tpu_custom_call.1} parent=15 // pred_check
        %p105 = pneg %p28
      $region18: #{tpu_custom_call.1} parent=15 // pred_check_branch
        %107 = sbr.rel (%p105) target = $region20
      $region19: #{tpu_custom_call.1} parent=15 // pred_region
        %s108 = smul.u32 2, %s8
        %s109 = ssub.s32 5, %s108
        %p110 = scmp.lt.s32.totalorder %s109, 2
        %s111 = scalar_select %p110, %s109, 2
        %s112 = smul.u32 128, %s111
        %p113 = scmp.lt.s32.totalorder %s108, 4
        %s114 = scalar_select %p113, %s108, 4
        %s115 = smul.addr %s114, 8
        %s116 = scalar_lea.vmem %s0, %s115
        %s117 = smul.u32 2, %s8
        %s118 = ssub.s32 5, %s117
        %p119 = scmp.lt.s32.totalorder %s118, 2
        %s120 = scalar_select %p119, %s118, 2
        %s121 = smul.u32 128, %s120
      $region20: #{tpu_custom_call.1} parent=15 // pred_fallthru
        _
      // Predicated region
      $region21: #{tpu_custom_call.1} parent=15 // pred_check
        %p122 = pneg %p54
      $region22: #{tpu_custom_call.1} parent=15 // pred_check_branch
        %124 = sbr.rel (%p122) target = $region24
      $region23: #{tpu_custom_call.1} parent=15 // pred_region
        %s125 = smul.u32 2, %s8
        %s126 = ssub.s32 5, %s125
        %p127 = scmp.lt.s32.totalorder %s126, 2
        %s128 = scalar_select %p127, %s126, 2
        %s129 = smul.u32 128, %s128
        %p130 = scmp.lt.s32.totalorder %s125, 4
        %s131 = scalar_select %p130, %s125, 4
        %s132 = smul.addr %s131, 8
        %s133 = scalar_lea.vmem %s1, %s132
        %s134 = smul.u32 2, %s8
        %s135 = ssub.s32 5, %s134
        %p136 = scmp.lt.s32.totalorder %s135, 2
        %s137 = scalar_select %p136, %s135, 2
        %s138 = smul.u32 128, %s137
      $region24: #{tpu_custom_call.1} parent=15 // pred_fallthru
        _
    $region16: #{tpu_custom_call.1} parent=5 // pred_fallthru
      _
    %p139 = scmp.le.s32.totalorder 1, %s8
    %p140 = scmp.lt.s32.totalorder %s8, 4
    %p141 = pnand %p139, %p140
    %p142 = pneg %p141
    // Predicated region
    $region25: #{tpu_custom_call.1} parent=5 // pred_check
      _
    $region26: #{tpu_custom_call.1} parent=5 // pred_check_branch
      %144 = sbr.rel (%p141) target = $region28
    $region27: #{tpu_custom_call.1} parent=5 // pred_region
      %s145 = ssub.s32 %s8, 1
      %s146 = smul.u32 2, %s13
      %s147 = ssub.s32 5, %s146
      %p148 = scmp.lt.s32.totalorder %s147, 2
      %s149 = scalar_select %p148, %s147, 2
      %s150 = smul.u32 128, %s149
      %p151 = scmp.lt.s32.totalorder %s146, 4
      %s152 = scalar_select %p151, %s146, 4
      %s153 = smul.addr %s152, 8
      %s154 = scalar_lea.vmem %s0, %s153
      %p155 = pneg %p34
      %p156 = pneg %p31
      %s157 = smul.u32 2, %s13
      %s158 = ssub.s32 5, %s157
      %p159 = scmp.lt.s32.totalorder %s158, 2
      %s160 = scalar_select %p159, %s158, 2
      %s161 = smul.u32 128, %s160
      %p162 = scmp.lt.s32.totalorder %s157, 4
      %s163 = scalar_select %p162, %s157, 4
      %s164 = smul.addr %s163, 8
      %s165 = scalar_lea.vmem %s1, %s164
      %p166 = pneg %p60
      %p167 = pneg %p57
      %p168 = pneg %p86
      %p169 = pneg %p83
      %p170 = scmp.lt.s32.totalorder %s13, 2
      %s171 = scalar_select %p170, %s13, 2
      %s172 = scalar_lea.vmem %s2, %s171
      %s173 = smul.u32 2, %s13
      %s174 = ssub.s32 5, %s173
      %p175 = scmp.lt.s32.totalorder %s174, 2
      %s176 = scalar_select %p175, %s174, 2
      %s177 = smul.u32 128, %s176
      %p178 = scmp.lt.s32.totalorder %s173, 4
      %s179 = scalar_select %p178, %s173, 4
      %s180 = smul.addr %s179, 8
      %s181 = scalar_lea.vmem %s0, %s180
      %s182 = smul.u32 2, %s13
      %s183 = ssub.s32 5, %s182
      %p184 = scmp.lt.s32.totalorder %s183, 2
      %s185 = scalar_select %p184, %s183, 2
      %s186 = smul.u32 128, %s185
      %s187 = smul.u32 2, %s13
      %s188 = ssub.s32 5, %s187
      %p189 = scmp.lt.s32.totalorder %s188, 2
      %s190 = scalar_select %p189, %s188, 2
      %s191 = smul.u32 128, %s190
      %p192 = scmp.lt.s32.totalorder %s187, 4
      %s193 = scalar_select %p192, %s187, 4
      %s194 = smul.addr %s193, 8
      %s195 = scalar_lea.vmem %s1, %s194
      %s196 = smul.u32 2, %s13
      %s197 = ssub.s32 5, %s196
      %p198 = scmp.lt.s32.totalorder %s197, 2
      %s199 = scalar_select %p198, %s197, 2
      %s200 = smul.u32 128, %s199
      %p201 = scmp.lt.s32.totalorder %s13, 2
      %s202 = scalar_select %p201, %s13, 2
      %s203 = scalar_lea.vmem %s2, %s202
      %v204 = vld [vmem:[%s181] sm:$0xff]
      %v205 = vld [vmem:[%s181 + $0x8] sm:$0xff]
      %v206 = vld [vmem:[%s195] sm:$0xff]
      %v207 = vld [vmem:[%s195 + $0x8] sm:$0xff]
      %vm208 = vcmask 130048
      %v209 = vsel %vm208, %v204, -inf
      %210 = vmax.xlane.f32.xlu0 %v209
      %v211 = vpop.xlane.xlu0 %210
      %v212 = vsel %vm208, %v205, -inf
      %213 = vmax.xlane.f32.xlu0 %v212
      %v214 = vpop.xlane.xlu0 %213
      %v215 = vsub.f32 %v204, %v211
      %v216 = vsub.f32 %v205, %v214
      %v217 = vmul.f32 %v215, 1.442695
      %v218 = vpow.pop %v217
      %v219 = vmul.f32 %v216, 1.442695
      %v220 = vpow.pop %v219
      %v221 = vsel %vm208, %v218, 0.0
      %222 = vadd.xlane.f32.xlu0 %v221
      %v223 = vpop.xlane.xlu0 %222
      %v224 = vsel %vm208, %v220, 0.0
      %225 = vadd.xlane.f32.xlu0 %v224
      %v226 = vpop.xlane.xlu0 %225
      %v227 = vlog2.pop %v223
      %v228 = vmul.f32 %v227, 0.6931472
      %v229 = vlog2.pop %v226
      %v230 = vmul.f32 %v229, 0.6931472
      %v231 = vadd.f32 %v228, %v211
      %v232 = vadd.f32 %v230, %v214
      %v233 = vlaneseq
      %v234 = vand.u32 %v233, 127
      %235 = vset.pattern.permute.xlu0 0
      %236 = vperm.xlu0 %235, %v206
      %v237 = vpop.permute.xlu0 %236
      %238 = vset.pattern.permute.xlu0 0
      %239 = vperm.xlu0 %238, %v207
      %v240 = vpop.permute.xlu0 %239
      %vm241 = vcmp.eq.s32.totalorder %v234, %v237
      %vm242 = vcmp.eq.s32.totalorder %v234, %v240
      %v243 = vsel %vm241, 1, 0
      %v244 = vsel %vm242, 1, 0
      %v245 = vcvt.s32.f32 %v243
      %v246 = vcvt.s32.f32 %v244
      %v247 = vmul.f32 %v204, %v245
      %v248 = vmul.f32 %v205, %v246
      %v249 = vsel %vm208, %v247, 0.0
      %250 = vadd.xlane.f32.xlu0 %v249
      %v251 = vpop.xlane.xlu0 %250
      %v252 = vsel %vm208, %v248, 0.0
      %253 = vadd.xlane.f32.xlu0 %v252
      %v254 = vpop.xlane.xlu0 %253
      %v255 = vsub.f32 %v231, %v251
      %v256 = vsub.f32 %v232, %v254
      %v257 = vsub.f32 0.0, %v255
      %v258 = vsub.f32 0.0, %v256
      %v259 = vmul.f32 %v257, 1.442695
      %v260 = vpow.pop %v259
      %v261 = vmul.f32 %v258, 1.442695
      %v262 = vpow.pop %v261
      %v263 = vsub.f32 1.0, %v260
      %v264 = vsub.f32 1.0, %v262
      %v265 = vmax.f32 %v263, 0.0
      %v266 = vmax.f32 %v264, 0.0
      %v267 = vmul.f32 %v265, %v265
      %v268 = vmul.f32 %v266, %v266
      %v269 = vmul.f32 %v267, %v255
      %v270 = vmul.f32 %v268, %v256
      %s271 = smul.u32 %s13, 16
      %s272 = ssub.s32 37, %s271
      %v273 = vlaneseq
      %v274 = vshrl.u32 %v273, 7
      %v275 = vadd.s32 %v274, 8
      %v276 = vstv %s272
      %vm277 = vcmp.lt.s32.totalorder %v274, %v276
      %vm278 = vcmp.lt.s32.totalorder %v275, %v276
      %v279 = vsel %vm277, %v269, 0.0
      %v280 = vsel %vm278, %v270, 0.0
      %vm281 = vcmask 7168
      %v282 = vsel %vm281, %v279, 0.0
      %v283 = vsel %vm281, %v280, 0.0
      %v284 = vadd.f32 %v282, %v283
      %285 = vadd.xlane.f32.xlu0 %v284
      %v286 = vpop.xlane.xlu0 %285
      %v287 = vrot.slane %v286, 4
      %v288 = vadd.f32 %v286, %v287
      %v289 = vrot.slane %v288, 2
      %v290 = vadd.f32 %v288, %v289
      %v291 = vrot.slane %v290, 1
      %v292 = vadd.f32 %v290, %v291
      %s293 = vtos %v292
      %v294 = vstv %s293
      %vm295 = vcmask 0
      %296 = vst.msk [vmem:[%s203] sm:$0x1] %vm295, %v294
      %p297 = scmp.lt.s32.totalorder %s13, 2
      %s298 = scalar_select %p297, %s13, 2
      %s299 = scalar_lea.vmem %s2, %s298
      // Predicated region
      $region29: #{tpu_custom_call.1} parent=27 // pred_check
        %p300 = pneg %p83
      $region30: #{tpu_custom_call.1} parent=27 // pred_check_branch
        %302 = sbr.rel (%p300) target = $region32
      $region31: #{tpu_custom_call.1} parent=27 // pred_region
        _
      $region32: #{tpu_custom_call.1} parent=27 // pred_fallthru
        _
    $region28: #{tpu_custom_call.1} parent=5 // pred_fallthru
      _
    %p303 = scmp.le.s32.totalorder 2, %s8
    // Predicated region
    $region33: #{tpu_custom_call.1} parent=5 // pred_check
      %p304 = pneg %p303
    $region34: #{tpu_custom_call.1} parent=5 // pred_check_branch
      %306 = sbr.rel (%p304) target = $region36
    $region35: #{tpu_custom_call.1} parent=5 // pred_region
      %s307 = ssub.s32 %s8, 2
      // Predicated region
      $region37: #{tpu_custom_call.1} parent=35 // pred_check
        %p308 = pneg %p89
      $region38: #{tpu_custom_call.1} parent=35 // pred_check_branch
        %310 = sbr.rel (%p308) target = $region40
      $region39: #{tpu_custom_call.1} parent=35 // pred_region
        %p311 = scmp.lt.s32.totalorder %s14, 2
        %s312 = scalar_select %p311, %s14, 2
        %s313 = scalar_lea.vmem %s2, %s312
      $region40: #{tpu_custom_call.1} parent=35 // pred_fallthru
        _
    $region36: #{tpu_custom_call.1} parent=5 // pred_fallthru
      _
  $region6: #{tpu_custom_call.1} parent=0 // loop_footer
    %s12 = sadd.s32 1, %s8
  $region7: #{tpu_custom_call.1} parent=0 // loop_footer_branch
    %7 = sbr.rel target = $region3
  $region8: #{tpu_custom_call.1} parent=0 // loop_exit
    _

</llo_original>
